<compile_context>
chip_gen: v6e
topology: v6e:2x2x1
jax: 0.10.0
libtpu: 0.0.40
codegen_flags: <defaults>
</compile_context>

<pallas_src>
import functools

import jax
import jax.numpy as jnp
from jax.experimental import pallas as pl
from jax.experimental.pallas import tpu as pltpu


def _pinet_kernel(x_ref, w1_ref, b1_ref, w2_ref, b2_ref, o_ref):
    # Hidden layer: Linear + ReLU (MXU matmul, f32 accumulation).
    h = jnp.dot(x_ref[...], w1_ref[...], preferred_element_type=jnp.float32)
    h = jnp.maximum(h + b1_ref[...], 0.0)

    # Output layer: Linear at native O width (no lane padding).
    logits = jnp.dot(h, w2_ref[...], preferred_element_type=jnp.float32)
    logits = logits + b2_ref[...]

    # Numerically-stable softmax over the last axis. Exact divide so each row
    # sums to 1 to float32 precision (probabilities feed REINFORCE log-probs).
    m = jnp.max(logits, axis=-1, keepdims=True)
    e = jnp.exp(logits - m)
    denom = jnp.sum(e, axis=-1, keepdims=True)
    o_ref[...] = (e / denom).astype(o_ref.dtype)


def pinet_forward(x, w1, b1, w2, b2, *, block_b=2048):
    """x: (B, F); w1: (F, H); b1: (1, H); w2: (H, O); b2: (1, O) -> (B, O)."""
    B, F = x.shape
    H = w1.shape[1]
    O = w2.shape[1]

    # Batch tile: as large as block_b allows (amortize per-step overhead), but
    # no larger than ceil(B/2) so the grid has >= 2 steps for v7x's 2 TCs, and
    # rounded to a sublane multiple of 8. Per-row VMEM is only ~(F+O)*4 bytes,
    # so even tm in the thousands fits comfortably in VMEM double-buffered.
    target = min(block_b, pl.cdiv(B, 2))
    tm = max(8, ((target + 7) // 8) * 8)
    tm = min(tm, max(8, ((B + 7) // 8) * 8))  # never (much) bigger than B
    grid = (pl.cdiv(B, tm),)                  # ragged last tile handled by Pallas

    flops = 2 * B * (F * H + H * O)
    transcendentals = B * O  # exp over the real output width only
    bytes_accessed = 4 * (B * F + F * H + H + H * O + O + B * O)

    out = pl.pallas_call(
        _pinet_kernel,
        out_shape=jax.ShapeDtypeStruct((B, O), jnp.float32),
        grid=grid,
        in_specs=[
            pl.BlockSpec((tm, F), lambda i: (i, 0)),   # x: tiled along batch
            pl.BlockSpec((F, H), lambda i: (0, 0)),    # w1: VMEM-resident
            pl.BlockSpec((1, H), lambda i: (0, 0)),    # b1: VMEM-resident
            pl.BlockSpec((H, O), lambda i: (0, 0)),    # w2: VMEM-resident
            pl.BlockSpec((1, O), lambda i: (0, 0)),    # b2: VMEM-resident
        ],
        out_specs=pl.BlockSpec((tm, O), lambda i: (i, 0)),
        compiler_params=pltpu.CompilerParams(
            dimension_semantics=("parallel",),
        ),
        cost_estimate=pl.CostEstimate(
            flops=flops,
            transcendentals=transcendentals,
            bytes_accessed=bytes_accessed,
        ),
    )(x, w1, b1, w2, b2)

    return out


def init_params(key, n_feature, n_hidden, n_output):
    """Deterministic init mimicking torch.nn.Linear's U(-1/sqrt(fan_in), 1/sqrt(fan_in))."""
    k1, k2, k3, k4 = jax.random.split(key, 4)
    bound1 = 1.0 / jnp.sqrt(n_feature)
    bound2 = 1.0 / jnp.sqrt(n_hidden)
    # Stored already transposed (fan_in, fan_out) for x @ W.
    w1 = jax.random.uniform(k1, (n_feature, n_hidden), jnp.float32, -bound1, bound1)
    b1 = jax.random.uniform(k2, (1, n_hidden), jnp.float32, -bound1, bound1)
    w2 = jax.random.uniform(k3, (n_hidden, n_output), jnp.float32, -bound2, bound2)
    b2 = jax.random.uniform(k4, (1, n_output), jnp.float32, -bound2, bound2)
    return w1, b1, w2, b2


if __name__ == "__main__":
    n_feature, n_hidden, n_output = 32, 32, 8
    # Many samples through a single pallas_call; with the default block_b the
    # tile clamps to ceil(B/2)=128 rows -> a 2-step "parallel" grid.
    batch = 256

    key = jax.random.PRNGKey(0)
    kx, kp = jax.random.split(key)
    x = jax.random.normal(kx, (batch, n_feature), jnp.float32)
    w1, b1, w2, b2 = init_params(kp, n_feature, n_hidden, n_output)

    fwd = jax.jit(pinet_forward)
    out = fwd(x, w1, b1, w2, b2)
    out = jax.block_until_ready(out)

    # Reference in plain JAX (same math as PyTorch PiNet.forward).
    h_ref = jnp.maximum(x @ w1 + b1, 0.0)
    ref = jax.nn.softmax(h_ref @ w2 + b2, axis=-1)
    assert out.shape == (batch, n_output)
    assert jnp.allclose(out, ref, atol=1e-4, rtol=1e-4)
    assert jnp.allclose(jnp.sum(out, axis=-1), 1.0, atol=1e-4)

    print("KERNEL_OK")
</pallas_src>

<mosaic_0001>
module attributes {stable_mosaic.version = 11 : i64} {
  func.func @_pinet_kernel(%arg0: i32, %arg1: memref<128x32xf32, #tpu.memory_space<vmem>>, %arg2: memref<32x32xf32, #tpu.memory_space<vmem>>, %arg3: memref<1x32xf32, #tpu.memory_space<vmem>>, %arg4: memref<32x8xf32, #tpu.memory_space<vmem>>, %arg5: memref<1x8xf32, #tpu.memory_space<vmem>>, %arg6: memref<128x8xf32, #tpu.memory_space<vmem>>) attributes {dimension_semantics = [#tpu.dimension_semantics<parallel>], iteration_bounds = array<i64: 2>, scalar_prefetch = 0 : i64, scratch_operands = 0 : i64, tpu.core_type = #tpu.core_type<tc>, window_params = [{transform_indices = @transform_0, window_bounds = array<i64: 128, 32>}, {pipeline_mode = #tpu.pipeline_mode<synchronous>, transform_indices = @transform_1, window_bounds = array<i64: 32, 32>}, {pipeline_mode = #tpu.pipeline_mode<synchronous>, transform_indices = @transform_2, window_bounds = array<i64: 1, 32>}, {pipeline_mode = #tpu.pipeline_mode<synchronous>, transform_indices = @transform_3, window_bounds = array<i64: 32, 8>}, {pipeline_mode = #tpu.pipeline_mode<synchronous>, transform_indices = @transform_4, window_bounds = array<i64: 1, 8>}, {transform_indices = @transform_5, window_bounds = array<i64: 128, 8>}]} {
    %c0 = arith.constant 0 : index
    %c0_0 = arith.constant 0 : index
    %0 = vector.load %arg1[%c0, %c0_0] : memref<128x32xf32, #tpu.memory_space<vmem>>, vector<128x32xf32>
    %c0_1 = arith.constant 0 : index
    %c0_2 = arith.constant 0 : index
    %1 = vector.load %arg2[%c0_1, %c0_2] : memref<32x32xf32, #tpu.memory_space<vmem>>, vector<32x32xf32>
    %cst = arith.constant dense<0.000000e+00> : vector<128x32xf32>
    %2 = tpu.matmul %0, %1, %cst {dimension_numbers = #tpu.dot_dimension_numbers<[1], [0], [0], [1], [0, 0, 1, 1], [], []>} : vector<128x32xf32>, vector<32x32xf32>, vector<128x32xf32> -> vector<128x32xf32>
    %c0_3 = arith.constant 0 : index
    %c0_4 = arith.constant 0 : index
    %3 = vector.load %arg3[%c0_3, %c0_4] : memref<1x32xf32, #tpu.memory_space<vmem>>, vector<1x32xf32>
    %4 = vector.broadcast %3 : vector<1x32xf32> to vector<128x32xf32>
    %5 = arith.addf %2, %4 : vector<128x32xf32>
    %cst_5 = arith.constant 0.000000e+00 : f32
    %6 = vector.broadcast %cst_5 : f32 to vector<128x32xf32>
    %7 = arith.maximumf %5, %6 : vector<128x32xf32>
    %c0_6 = arith.constant 0 : index
    %c0_7 = arith.constant 0 : index
    %8 = vector.load %arg4[%c0_6, %c0_7] : memref<32x8xf32, #tpu.memory_space<vmem>>, vector<32x8xf32>
    %cst_8 = arith.constant dense<0.000000e+00> : vector<128x8xf32>
    %9 = tpu.matmul %7, %8, %cst_8 {dimension_numbers = #tpu.dot_dimension_numbers<[1], [0], [0], [1], [0, 0, 1, 1], [], []>} : vector<128x32xf32>, vector<32x8xf32>, vector<128x8xf32> -> vector<128x8xf32>
    %c0_9 = arith.constant 0 : index
    %c0_10 = arith.constant 0 : index
    %10 = vector.load %arg5[%c0_9, %c0_10] : memref<1x8xf32, #tpu.memory_space<vmem>>, vector<1x8xf32>
    %11 = vector.broadcast %10 : vector<1x8xf32> to vector<128x8xf32>
    %12 = arith.addf %9, %11 : vector<128x8xf32>
    %cst_11 = arith.constant dense<0xFF800000> : vector<128xf32>
    %13 = vector.multi_reduction <maximumf>, %12, %cst_11 [1] : vector<128x8xf32> to vector<128xf32>
    %14 = vector.shape_cast %13 : vector<128xf32> to vector<128x1xf32>
    %15 = vector.broadcast %14 : vector<128x1xf32> to vector<128x8xf32>
    %16 = arith.subf %12, %15 : vector<128x8xf32>
    %17 = math.exp %16 : vector<128x8xf32>
    %cst_12 = arith.constant dense<0.000000e+00> : vector<128xf32>
    %18 = vector.multi_reduction <add>, %17, %cst_12 [1] : vector<128x8xf32> to vector<128xf32>
    %19 = vector.shape_cast %18 : vector<128xf32> to vector<128x1xf32>
    %20 = vector.broadcast %19 : vector<128x1xf32> to vector<128x8xf32>
    %21 = arith.divf %17, %20 : vector<128x8xf32>
    %c0_13 = arith.constant 0 : index
    %c0_14 = arith.constant 0 : index
    %22 = vector.load %arg6[%c0_13, %c0_14] : memref<128x8xf32, #tpu.memory_space<vmem>>, vector<128x8xf32>
    tpu.vector_store %arg6[%c0_13, %c0_14], %21 {strides = array<i32>} : memref<128x8xf32, #tpu.memory_space<vmem>>, vector<128x8xf32>,
    return
  }
  func.func @transform_0(%arg0: i32) -> (i32, i32) {
    %c0_i32 = arith.constant 0 : i32
    %c0_i32_0 = arith.constant 0 : i32
    return %arg0, %c0_i32 : i32, i32
  }
  func.func @transform_1(%arg0: i32) -> (i32, i32) {
    %c0_i32 = arith.constant 0 : i32
    %c0_i32_0 = arith.constant 0 : i32
    %c0_i32_1 = arith.constant 0 : i32
    return %c0_i32, %c0_i32_0 : i32, i32
  }
  func.func @transform_2(%arg0: i32) -> (i32, i32) {
    %c0_i32 = arith.constant 0 : i32
    %c0_i32_0 = arith.constant 0 : i32
    %c0_i32_1 = arith.constant 0 : i32
    return %c0_i32, %c0_i32_0 : i32, i32
  }
  func.func @transform_3(%arg0: i32) -> (i32, i32) {
    %c0_i32 = arith.constant 0 : i32
    %c0_i32_0 = arith.constant 0 : i32
    %c0_i32_1 = arith.constant 0 : i32
    return %c0_i32, %c0_i32_0 : i32, i32
  }
  func.func @transform_4(%arg0: i32) -> (i32, i32) {
    %c0_i32 = arith.constant 0 : i32
    %c0_i32_0 = arith.constant 0 : i32
    %c0_i32_1 = arith.constant 0 : i32
    return %c0_i32, %c0_i32_0 : i32, i32
  }
  func.func @transform_5(%arg0: i32) -> (i32, i32) {
    %c0_i32 = arith.constant 0 : i32
    %c0_i32_0 = arith.constant 0 : i32
    return %arg0, %c0_i32 : i32, i32
  }
}

</mosaic_0001>

<llo_original>
// kernel: pinet_forward.1
$region0: #{pinet_forward.1}
  #allocation0 [shape = 'u32[]', space=smem, size = 0x4, offset = 0x4, fixed_abs, tag = 'smem constant byte address 0x4 - core index']
  #allocation1 [shape = 'u32[144,128]{1,0:T(1,128)}', space=vmem, size = 0x12000, scoped, tag = 'internal scratch']
  %s0 = inlined_call_operand.vmem [shape: f32[256,32], index: 0, kind: input, shape index: {}]
  %s1 = inlined_call_operand.vmem [shape: f32[32,32], index: 1, kind: input, shape index: {}]
  %s2 = inlined_call_operand.vmem [shape: f32[1,32], index: 2, kind: input, shape index: {}]
  %s3 = inlined_call_operand.vmem [shape: f32[32,8], index: 3, kind: input, shape index: {}]
  %s4 = inlined_call_operand.vmem [shape: f32[1,8], index: 4, kind: input, shape index: {}]
  %s5 = inlined_call_operand.vmem [shape: f32[256,8], index: 5, kind: output, shape index: {}]
  %s6 = sld [smem:[#allocation0]]
  $region53: #{pinet_forward.1} parent=0
    _
  %s8 = ssub.s32 1, %s6
  %s9 = scalar_select 0, %s8, %s6
  loop: start=0, step=1, limit=4
  $region2: #{pinet_forward.1} parent=0 // loop_pre_header
    _
  $region3: #{pinet_forward.1} parent=0 // loop_header
    %s11 = sphi 0, %s15
    %p12 = scmp.ge.s32.totalorder %s11, 4
    %s21 = sphi 0, %s23
    %s24 = sphi 0, %s21
    %s25 = sphi 0, %s24
    %s41 = sphi 0, %s25
    %s45 = sphi 0, %s45
    %s47 = sphi 0, %s45
    %s48 = sphi 0, %s47
    %s62 = sphi 0, %s48
    %s66 = sphi 0, %s66
    %s68 = sphi 0, %s66
    %s69 = sphi 0, %s68
    %s83 = sphi 0, %s69
    %s87 = sphi 0, %s87
    %s89 = sphi 0, %s87
    %s90 = sphi 0, %s89
    %s104 = sphi 0, %s90
    %s108 = sphi 0, %s108
    %s110 = sphi 0, %s108
    %s111 = sphi 0, %s110
    %s125 = sphi 0, %s111
    %s131 = sphi 0, %s133
    %s134 = sphi 0, %s131
    %s135 = sphi 0, %s134
    %s151 = sphi 0, %s135
  $region4: #{pinet_forward.1} parent=0 // loop_header_branch
    %14 = sbr.rel (%p12) target = $region8
  $region5: #{pinet_forward.1} parent=0 // loop_body
    %s16 = ssub.s32 %s11, 1
    %s17 = ssub.s32 %s11, 2
    %s18 = sadd.s32 %s11, 1
    %s19 = ssub.s32 %s11, %s18
    %p20 = scmp.eq.s32.totalorder %s19, 0
    %s22 = sadd.s32 %s21, 1
    %s23 = scalar_select %p20, %s21, %s22
    %p26 = pneg %p20
    %p27 = scmp.eq.s32.totalorder %s11, 1
    %p28 = por %p26, %p27
    %p29 = scmp.ne.s32.totalorder %s21, %s24
    %p30 = scmp.eq.s32.totalorder %s11, 0
    %p31 = por %p29, %p30
    %p32 = scmp.ne.s32.totalorder %s21, %s24
    %p33 = scmp.eq.s32.totalorder %s16, 1
    %p34 = por %p32, %p33
    %p35 = scmp.ne.s32.totalorder %s24, %s25
    %p36 = scmp.eq.s32.totalorder %s16, 0
    %p37 = por %p35, %p36
    %p38 = scmp.ne.s32.totalorder %s24, %s25
    %p39 = scmp.eq.s32.totalorder %s17, 1
    %p40 = por %p38, %p39
    %p42 = scmp.ne.s32.totalorder %s25, %s41
    %p43 = scmp.eq.s32.totalorder %s17, 0
    %p44 = por %p42, %p43
    %s46 = sadd.s32 %s45, 1
    %p49 = scmp.eq.s32.totalorder %s11, 1
    %p50 = scmp.ne.s32.totalorder %s45, %s47
    %p51 = scmp.eq.s32.totalorder %s11, 0
    %p52 = por %p50, %p51
    %p53 = scmp.ne.s32.totalorder %s45, %s47
    %p54 = scmp.eq.s32.totalorder %s16, 1
    %p55 = por %p53, %p54
    %p56 = scmp.ne.s32.totalorder %s47, %s48
    %p57 = scmp.eq.s32.totalorder %s16, 0
    %p58 = por %p56, %p57
    %p59 = scmp.ne.s32.totalorder %s47, %s48
    %p60 = scmp.eq.s32.totalorder %s17, 1
    %p61 = por %p59, %p60
    %p63 = scmp.ne.s32.totalorder %s48, %s62
    %p64 = scmp.eq.s32.totalorder %s17, 0
    %p65 = por %p63, %p64
    %s67 = sadd.s32 %s66, 1
    %p70 = scmp.eq.s32.totalorder %s11, 1
    %p71 = scmp.ne.s32.totalorder %s66, %s68
    %p72 = scmp.eq.s32.totalorder %s11, 0
    %p73 = por %p71, %p72
    %p74 = scmp.ne.s32.totalorder %s66, %s68
    %p75 = scmp.eq.s32.totalorder %s16, 1
    %p76 = por %p74, %p75
    %p77 = scmp.ne.s32.totalorder %s68, %s69
    %p78 = scmp.eq.s32.totalorder %s16, 0
    %p79 = por %p77, %p78
    %p80 = scmp.ne.s32.totalorder %s68, %s69
    %p81 = scmp.eq.s32.totalorder %s17, 1
    %p82 = por %p80, %p81
    %p84 = scmp.ne.s32.totalorder %s69, %s83
    %p85 = scmp.eq.s32.totalorder %s17, 0
    %p86 = por %p84, %p85
    %s88 = sadd.s32 %s87, 1
    %p91 = scmp.eq.s32.totalorder %s11, 1
    %p92 = scmp.ne.s32.totalorder %s87, %s89
    %p93 = scmp.eq.s32.totalorder %s11, 0
    %p94 = por %p92, %p93
    %p95 = scmp.ne.s32.totalorder %s87, %s89
    %p96 = scmp.eq.s32.totalorder %s16, 1
    %p97 = por %p95, %p96
    %p98 = scmp.ne.s32.totalorder %s89, %s90
    %p99 = scmp.eq.s32.totalorder %s16, 0
    %p100 = por %p98, %p99
    %p101 = scmp.ne.s32.totalorder %s89, %s90
    %p102 = scmp.eq.s32.totalorder %s17, 1
    %p103 = por %p101, %p102
    %p105 = scmp.ne.s32.totalorder %s90, %s104
    %p106 = scmp.eq.s32.totalorder %s17, 0
    %p107 = por %p105, %p106
    %s109 = sadd.s32 %s108, 1
    %p112 = scmp.eq.s32.totalorder %s11, 1
    %p113 = scmp.ne.s32.totalorder %s108, %s110
    %p114 = scmp.eq.s32.totalorder %s11, 0
    %p115 = por %p113, %p114
    %p116 = scmp.ne.s32.totalorder %s108, %s110
    %p117 = scmp.eq.s32.totalorder %s16, 1
    %p118 = por %p116, %p117
    %p119 = scmp.ne.s32.totalorder %s110, %s111
    %p120 = scmp.eq.s32.totalorder %s16, 0
    %p121 = por %p119, %p120
    %p122 = scmp.ne.s32.totalorder %s110, %s111
    %p123 = scmp.eq.s32.totalorder %s17, 1
    %p124 = por %p122, %p123
    %p126 = scmp.ne.s32.totalorder %s111, %s125
    %p127 = scmp.eq.s32.totalorder %s17, 0
    %p128 = por %p126, %p127
    %s129 = ssub.s32 %s11, %s18
    %p130 = scmp.eq.s32.totalorder %s129, 0
    %s132 = sadd.s32 %s131, 1
    %s133 = scalar_select %p130, %s131, %s132
    %p136 = pneg %p130
    %p137 = scmp.eq.s32.totalorder %s11, 1
    %p138 = por %p136, %p137
    %p139 = scmp.ne.s32.totalorder %s131, %s134
    %p140 = scmp.eq.s32.totalorder %s11, 0
    %p141 = por %p139, %p140
    %p142 = scmp.ne.s32.totalorder %s131, %s134
    %p143 = scmp.eq.s32.totalorder %s16, 1
    %p144 = por %p142, %p143
    %p145 = scmp.ne.s32.totalorder %s134, %s135
    %p146 = scmp.eq.s32.totalorder %s16, 0
    %p147 = por %p145, %p146
    %p148 = scmp.ne.s32.totalorder %s134, %s135
    %p149 = scmp.eq.s32.totalorder %s17, 1
    %p150 = por %p148, %p149
    %p152 = scmp.ne.s32.totalorder %s135, %s151
    %p153 = scmp.eq.s32.totalorder %s17, 0
    %p154 = por %p152, %p153
    %p155 = scmp.le.s32.totalorder 1, %s11
    %p156 = scmp.lt.s32.totalorder %s11, 3
    %p157 = pnand %p155, %p156
    %p158 = pneg %p157
    // Predicated region
    $region9: #{pinet_forward.1} parent=5 // pred_check
      _
    $region10: #{pinet_forward.1} parent=5 // pred_check_branch
      %160 = sbr.rel (%p157) target = $region12
    $region11: #{pinet_forward.1} parent=5 // pred_region
      %s161 = ssub.s32 %s11, 1
      // Predicated region
      $region13: #{pinet_forward.1} parent=11 // pred_check
        %p162 = pneg %p58
      $region14: #{pinet_forward.1} parent=11 // pred_check_branch
        %164 = sbr.rel (%p162) target = $region16
      $region15: #{pinet_forward.1} parent=11 // pred_region
        _
      $region16: #{pinet_forward.1} parent=11 // pred_fallthru
        _
      // Predicated region
      $region17: #{pinet_forward.1} parent=11 // pred_check
        %p165 = pneg %p79
      $region18: #{pinet_forward.1} parent=11 // pred_check_branch
        %167 = sbr.rel (%p165) target = $region20
      $region19: #{pinet_forward.1} parent=11 // pred_region
        _
      $region20: #{pinet_forward.1} parent=11 // pred_fallthru
        _
      // Predicated region
      $region21: #{pinet_forward.1} parent=11 // pred_check
        %p168 = pneg %p100
      $region22: #{pinet_forward.1} parent=11 // pred_check_branch
        %170 = sbr.rel (%p168) target = $region24
      $region23: #{pinet_forward.1} parent=11 // pred_region
        _
      $region24: #{pinet_forward.1} parent=11 // pred_fallthru
        _
      // Predicated region
      $region25: #{pinet_forward.1} parent=11 // pred_check
        %p171 = pneg %p121
      $region26: #{pinet_forward.1} parent=11 // pred_check_branch
        %173 = sbr.rel (%p171) target = $region28
      $region27: #{pinet_forward.1} parent=11 // pred_region
        _
      $region28: #{pinet_forward.1} parent=11 // pred_fallthru
        _
    $region12: #{pinet_forward.1} parent=5 // pred_fallthru
      _
    %p174 = scmp.lt.s32.totalorder %s11, 2
    // Predicated region
    $region29: #{pinet_forward.1} parent=5 // pred_check
      %p175 = pneg %p174
    $region30: #{pinet_forward.1} parent=5 // pred_check_branch
      %177 = sbr.rel (%p175) target = $region32
    $region31: #{pinet_forward.1} parent=5 // pred_region
      // Predicated region
      $region33: #{pinet_forward.1} parent=31 // pred_check
        %p178 = pneg %p31
      $region34: #{pinet_forward.1} parent=31 // pred_check_branch
        %180 = sbr.rel (%p178) target = $region36
      $region35: #{pinet_forward.1} parent=31 // pred_region
        %s181 = smul.u32 16, %s11
        %p182 = scmp.lt.s32.totalorder %s181, 31
        %s183 = scalar_select %p182, %s181, 31
        %s184 = smul.addr %s183, 8
        %s185 = scalar_lea.vmem %s0, %s184
        %s186 = smul.u32 16, %s11
      $region36: #{pinet_forward.1} parent=31 // pred_fallthru
        _
    $region32: #{pinet_forward.1} parent=5 // pred_fallthru
      _
    %p187 = scmp.le.s32.totalorder 1, %s11
    %p188 = scmp.lt.s32.totalorder %s11, 3
    %p189 = pnand %p187, %p188
    %p190 = pneg %p189
    // Predicated region
    $region37: #{pinet_forward.1} parent=5 // pred_check
      _
    $region38: #{pinet_forward.1} parent=5 // pred_check_branch
      %192 = sbr.rel (%p189) target = $region40
    $region39: #{pinet_forward.1} parent=5 // pred_region
      %s193 = ssub.s32 %s11, 1
      %s194 = smul.u32 16, %s16
      %p195 = scmp.lt.s32.totalorder %s194, 31
      %s196 = scalar_select %p195, %s194, 31
      %s197 = smul.addr %s196, 8
      %s198 = scalar_lea.vmem %s0, %s197
      %p199 = pneg %p37
      %p200 = pneg %p34
      %p201 = pneg %p58
      %p202 = pneg %p55
      %p203 = pneg %p79
      %p204 = pneg %p76
      %p205 = pneg %p100
      %p206 = pneg %p97
      %p207 = pneg %p121
      %p208 = pneg %p118
      %p209 = pneg %p147
      %p210 = pneg %p144
      %s211 = smul.u32 16, %s16
      %p212 = scmp.lt.s32.totalorder %s211, 31
      %s213 = scalar_select %p212, %s211, 31
      %s214 = smul.addr %s213, 8
      %s215 = scalar_lea.vmem %s5, %s214
      %s216 = smul.u32 16, %s16
      %p217 = scmp.lt.s32.totalorder %s216, 31
      %s218 = scalar_select %p217, %s216, 31
      %s219 = smul.addr %s218, 8
      %s220 = scalar_lea.vmem %s0, %s219
      %s221 = smul.u32 16, %s16
      %s222 = smul.u32 16, %s16
      %p223 = scmp.lt.s32.totalorder %s222, 31
      %s224 = scalar_select %p223, %s222, 31
      %s225 = smul.addr %s224, 8
      %s226 = scalar_lea.vmem %s5, %s225
      %s227 = smul.u32 16, %s16
      %v228 = vld [vmem:[%s220] sm:$0xff]
      %v229 = vld [vmem:[%s220 + $0x8] sm:$0xff]
      %v230 = vld [vmem:[%s220 + $0x10] sm:$0xff]
      %v231 = vld [vmem:[%s220 + $0x18] sm:$0xff]
      %v232 = vld [vmem:[%s220 + $0x20] sm:$0xff]
      %v233 = vld [vmem:[%s220 + $0x28] sm:$0xff]
      %v234 = vld [vmem:[%s220 + $0x30] sm:$0xff]
      %v235 = vld [vmem:[%s220 + $0x38] sm:$0xff]
      %v236 = vld [vmem:[%s220 + $0x40] sm:$0xff]
      %v237 = vld [vmem:[%s220 + $0x48] sm:$0xff]
      %v238 = vld [vmem:[%s220 + $0x50] sm:$0xff]
      %v239 = vld [vmem:[%s220 + $0x58] sm:$0xff]
      %v240 = vld [vmem:[%s220 + $0x60] sm:$0xff]
      %v241 = vld [vmem:[%s220 + $0x68] sm:$0xff]
      %v242 = vld [vmem:[%s220 + $0x70] sm:$0xff]
      %v243 = vld [vmem:[%s220 + $0x78] sm:$0xff]
      %v244 = vld [vmem:[%s1] sm:$0xff]
      %v245 = vld [vmem:[%s1 + $0x8] sm:$0xff]
      %v246 = vld [vmem:[%s1 + $0x10] sm:$0xff]
      %v247 = vld [vmem:[%s1 + $0x18] sm:$0xff]
      %v248 = vld [vmem:[%s2] sm:$0x1]
      %v250 = vlaneseq
      %v251 = vshrl.u32 %v250, 7
      %v252 = vsub.s32 0, %v251
      %v253 = vrot.slane %v248, %v252
      %vm255 = vcmask 261120
      %v257 = vsel %vm255, %v228, 0
      %v260 = vsel %vm255, %v229, 0
      %v263 = vsel %vm255, %v230, 0
      %v266 = vsel %vm255, %v231, 0
      %v269 = vsel %vm255, %v232, 0
      %v272 = vsel %vm255, %v233, 0
      %v275 = vsel %vm255, %v234, 0
      %v278 = vsel %vm255, %v235, 0
      %v281 = vsel %vm255, %v236, 0
      %v284 = vsel %vm255, %v237, 0
      %v287 = vsel %vm255, %v238, 0
      %v290 = vsel %vm255, %v239, 0
      %v293 = vsel %vm255, %v240, 0
      %v296 = vsel %vm255, %v241, 0
      %v299 = vsel %vm255, %v242, 0
      %v302 = vsel %vm255, %v243, 0
      %304 = vmatprep.subr.mxu0 0.0
      %305 = vmatpush1.msra.mxu0 0.0
      %306 = vmatprep.subr.mxu0 0.0
      %307 = vmatpush1.msra.mxu0 0.0
      %308 = vmatprep.subr.mxu0 0.0
      %309 = vmatpush1.msra.mxu0 0.0
      %310 = vmatprep.subr.mxu0 0.0
      %311 = vmatpush1.msra.mxu0 0.0
      %312 = vmatprep.subr.mxu0 0.0
      %313 = vmatpush1.msra.mxu0 0.0
      %314 = vmatprep.subr.mxu0 0.0
      %315 = vmatpush1.msra.mxu0 0.0
      %316 = vmatprep.subr.mxu0 0.0
      %317 = vmatpush1.msra.mxu0 0.0
      %318 = vmatprep.subr.mxu0 0.0
      %319 = vmatpush1.msra.mxu0 0.0
      %320 = vmatprep.subr.mxu0 0.0
      %321 = vmatpush1.msra.mxu0 0.0
      %322 = vmatprep.subr.mxu0 0.0
      %323 = vmatpush1.msra.mxu0 0.0
      %324 = vmatprep.subr.mxu0 0.0
      %325 = vmatpush1.msra.mxu0 0.0
      %326 = vmatprep.subr.mxu0 0.0
      %327 = vmatpush1.msra.mxu0 0.0
      %328 = vmatprep.subr.mxu0 0.0
      %329 = vmatpush1.msra.mxu0 %v247
      %330 = vmatprep.subr.mxu0 0.0
      %331 = vmatpush1.msra.mxu0 %v246
      %332 = vmatprep.subr.mxu0 0.0
      %333 = vmatpush1.msra.mxu0 %v245
      %334 = vmatprep.subr.mxu0 0.0
      %335 = vmatpush1.msra.mxu0 %v244
      %336 = vmatprep.subr.mxu0 0.0
      %337 = vmatpush2.msra.mxu0 0.0
      %338 = vmatprep.subr.mxu0 0.0
      %339 = vmatpush2.msra.mxu0 0.0
      %340 = vmatprep.subr.mxu0 0.0
      %341 = vmatpush2.msra.mxu0 0.0
      %342 = vmatprep.subr.mxu0 0.0
      %343 = vmatpush2.msra.mxu0 0.0
      %344 = vmatprep.subr.mxu0 0.0
      %345 = vmatpush2.msra.mxu0 0.0
      %346 = vmatprep.subr.mxu0 0.0
      %347 = vmatpush2.msra.mxu0 0.0
      %348 = vmatprep.subr.mxu0 0.0
      %349 = vmatpush2.msra.mxu0 0.0
      %350 = vmatprep.subr.mxu0 0.0
      %351 = vmatpush2.msra.mxu0 0.0
      %352 = vmatprep.subr.mxu0 0.0
      %353 = vmatpush2.msra.mxu0 0.0
      %354 = vmatprep.subr.mxu0 0.0
      %355 = vmatpush2.msra.mxu0 0.0
      %356 = vmatprep.subr.mxu0 0.0
      %357 = vmatpush2.msra.mxu0 0.0
      %358 = vmatprep.subr.mxu0 0.0
      %359 = vmatpush2.msra.mxu0 0.0
      %360 = vmatprep.subr.mxu0 0.0
      %361 = vmatpush2.msra.mxu0 0.0
      %362 = vmatprep.subr.mxu0 0.0
      %363 = vmatpush2.msra.mxu0 0.0
      %364 = vmatprep.subr.mxu0 0.0
      %365 = vmatpush2.msra.mxu0 0.0
      %366 = vmatprep.subr.mxu0 0.0
      %367 = vmatpush2.msra.mxu0 0.0
      %368 = vmatprep.mubr.f32.mxu0 0.0
      %369 = vmatmul.mubr.f32.gmra.mxu0 %v257
      %v370 = vpop.f32.mrf.mxu0
      %v371 = vadd.f32 %v253, %v370
      %v372 = vpop.f32.mrf.mxu0
      %373 = vmatprep.mubr.f32.mxu0 0.0
      %374 = vmatmul.mubr.f32.gmra.mxu0 %v260
      %v375 = vpop.f32.mrf.mxu0
      %v376 = vadd.f32 %v253, %v375
      %v377 = vpop.f32.mrf.mxu0
      %378 = vmatprep.mubr.f32.mxu0 0.0
      %379 = vmatmul.mubr.f32.gmra.mxu0 %v263
      %v380 = vpop.f32.mrf.mxu0
      %v381 = vadd.f32 %v253, %v380
      %v382 = vpop.f32.mrf.mxu0
      %383 = vmatprep.mubr.f32.mxu0 0.0
      %384 = vmatmul.mubr.f32.gmra.mxu0 %v266
      %v385 = vpop.f32.mrf.mxu0
      %v386 = vadd.f32 %v253, %v385
      %v387 = vpop.f32.mrf.mxu0
      %388 = vmatprep.mubr.f32.mxu0 0.0
      %389 = vmatmul.mubr.f32.gmra.mxu0 %v269
      %v390 = vpop.f32.mrf.mxu0
      %v391 = vadd.f32 %v253, %v390
      %v392 = vpop.f32.mrf.mxu0
      %393 = vmatprep.mubr.f32.mxu0 0.0
      %394 = vmatmul.mubr.f32.gmra.mxu0 %v272
      %v395 = vpop.f32.mrf.mxu0
      %v396 = vadd.f32 %v253, %v395
      %v397 = vpop.f32.mrf.mxu0
      %398 = vmatprep.mubr.f32.mxu0 0.0
      %399 = vmatmul.mubr.f32.gmra.mxu0 %v275
      %v400 = vpop.f32.mrf.mxu0
      %v401 = vadd.f32 %v253, %v400
      %v402 = vpop.f32.mrf.mxu0
      %403 = vmatprep.mubr.f32.mxu0 0.0
      %404 = vmatmul.mubr.f32.gmra.mxu0 %v278
      %v405 = vpop.f32.mrf.mxu0
      %v406 = vadd.f32 %v253, %v405
      %v407 = vpop.f32.mrf.mxu0
      %408 = vmatprep.mubr.f32.mxu0 0.0
      %409 = vmatmul.mubr.f32.gmra.mxu0 %v281
      %v410 = vpop.f32.mrf.mxu0
      %v411 = vadd.f32 %v253, %v410
      %v412 = vpop.f32.mrf.mxu0
      %413 = vmatprep.mubr.f32.mxu0 0.0
      %414 = vmatmul.mubr.f32.gmra.mxu0 %v284
      %v415 = vpop.f32.mrf.mxu0
      %v416 = vadd.f32 %v253, %v415
      %v417 = vpop.f32.mrf.mxu0
      %418 = vmatprep.mubr.f32.mxu0 0.0
      %419 = vmatmul.mubr.f32.gmra.mxu0 %v287
      %v420 = vpop.f32.mrf.mxu0
      %v421 = vadd.f32 %v253, %v420
      %v422 = vpop.f32.mrf.mxu0
      %423 = vmatprep.mubr.f32.mxu0 0.0
      %424 = vmatmul.mubr.f32.gmra.mxu0 %v290
      %v425 = vpop.f32.mrf.mxu0
      %v426 = vadd.f32 %v253, %v425
      %v427 = vpop.f32.mrf.mxu0
      %428 = vmatprep.mubr.f32.mxu0 0.0
      %429 = vmatmul.mubr.f32.gmra.mxu0 %v293
      %v430 = vpop.f32.mrf.mxu0
      %v431 = vadd.f32 %v253, %v430
      %v432 = vpop.f32.mrf.mxu0
      %433 = vmatprep.mubr.f32.mxu0 0.0
      %434 = vmatmul.mubr.f32.gmra.mxu0 %v296
      %v435 = vpop.f32.mrf.mxu0
      %v436 = vadd.f32 %v253, %v435
      %v437 = vpop.f32.mrf.mxu0
      %438 = vmatprep.mubr.f32.mxu0 0.0
      %439 = vmatmul.mubr.f32.gmra.mxu0 %v299
      %v440 = vpop.f32.mrf.mxu0
      %v441 = vadd.f32 %v253, %v440
      %v442 = vpop.f32.mrf.mxu0
      %443 = vmatprep.mubr.f32.mxu0 0.0
      %444 = vmatmul.mubr.f32.gmra.mxu0 %v302
      %v445 = vpop.f32.mrf.mxu0
      %v446 = vadd.f32 %v253, %v445
      %v447 = vpop.f32.mrf.mxu0
      %448 = vdwg.mxu0
      %v449 = vmax.f32 %v371, 0.0
      %v450 = vmax.f32 %v376, 0.0
      %v451 = vmax.f32 %v381, 0.0
      %v452 = vmax.f32 %v386, 0.0
      %v453 = vmax.f32 %v391, 0.0
      %v454 = vmax.f32 %v396, 0.0
      %v455 = vmax.f32 %v401, 0.0
      %v456 = vmax.f32 %v406, 0.0
      %v457 = vmax.f32 %v411, 0.0
      %v458 = vmax.f32 %v416, 0.0
      %v459 = vmax.f32 %v421, 0.0
      %v460 = vmax.f32 %v426, 0.0
      %v461 = vmax.f32 %v431, 0.0
      %v462 = vmax.f32 %v436, 0.0
      %v463 = vmax.f32 %v441, 0.0
      %v464 = vmax.f32 %v446, 0.0
      %v465 = vld [vmem:[%s3] sm:$0xff]
      %v466 = vld [vmem:[%s3 + $0x8] sm:$0xff]
      %v467 = vld [vmem:[%s3 + $0x10] sm:$0xff]
      %v468 = vld [vmem:[%s3 + $0x18] sm:$0xff]
      %v469 = vld [vmem:[%s4] sm:$0x1]
      %v471 = vlaneseq
      %v472 = vshrl.u32 %v471, 7
      %v473 = vsub.s32 0, %v472
      %v474 = vrot.slane %v469, %v473
      %v477 = vsel %vm255, %v449, 0
      %v480 = vsel %vm255, %v450, 0
      %v483 = vsel %vm255, %v451, 0
      %v486 = vsel %vm255, %v452, 0
      %v489 = vsel %vm255, %v453, 0
      %v492 = vsel %vm255, %v454, 0
      %v495 = vsel %vm255, %v455, 0
      %v498 = vsel %vm255, %v456, 0
      %v501 = vsel %vm255, %v457, 0
      %v504 = vsel %vm255, %v458, 0
      %v507 = vsel %vm255, %v459, 0
      %v510 = vsel %vm255, %v460, 0
      %v513 = vsel %vm255, %v461, 0
      %v516 = vsel %vm255, %v462, 0
      %v519 = vsel %vm255, %v463, 0
      %v522 = vsel %vm255, %v464, 0
      %524 = vmatprep.subr.mxu0 0.0
      %525 = vmatpush1.msra.mxu0 0.0
      %526 = vmatprep.subr.mxu0 0.0
      %527 = vmatpush1.msra.mxu0 0.0
      %528 = vmatprep.subr.mxu0 0.0
      %529 = vmatpush1.msra.mxu0 0.0
      %530 = vmatprep.subr.mxu0 0.0
      %531 = vmatpush1.msra.mxu0 0.0
      %532 = vmatprep.subr.mxu0 0.0
      %533 = vmatpush1.msra.mxu0 0.0
      %534 = vmatprep.subr.mxu0 0.0
      %535 = vmatpush1.msra.mxu0 0.0
      %536 = vmatprep.subr.mxu0 0.0
      %537 = vmatpush1.msra.mxu0 0.0
      %538 = vmatprep.subr.mxu0 0.0
      %539 = vmatpush1.msra.mxu0 0.0
      %540 = vmatprep.subr.mxu0 0.0
      %541 = vmatpush1.msra.mxu0 0.0
      %542 = vmatprep.subr.mxu0 0.0
      %543 = vmatpush1.msra.mxu0 0.0
      %544 = vmatprep.subr.mxu0 0.0
      %545 = vmatpush1.msra.mxu0 0.0
      %546 = vmatprep.subr.mxu0 0.0
      %547 = vmatpush1.msra.mxu0 0.0
      %548 = vmatprep.subr.mxu0 0.0
      %549 = vmatpush1.msra.mxu0 %v468
      %550 = vmatprep.subr.mxu0 0.0
      %551 = vmatpush1.msra.mxu0 %v467
      %552 = vmatprep.subr.mxu0 0.0
      %553 = vmatpush1.msra.mxu0 %v466
      %554 = vmatprep.subr.mxu0 0.0
      %555 = vmatpush1.msra.mxu0 %v465
      %556 = vmatprep.subr.mxu0 0.0
      %557 = vmatpush2.msra.mxu0 0.0
      %558 = vmatprep.subr.mxu0 0.0
      %559 = vmatpush2.msra.mxu0 0.0
      %560 = vmatprep.subr.mxu0 0.0
      %561 = vmatpush2.msra.mxu0 0.0
      %562 = vmatprep.subr.mxu0 0.0
      %563 = vmatpush2.msra.mxu0 0.0
      %564 = vmatprep.subr.mxu0 0.0
      %565 = vmatpush2.msra.mxu0 0.0
      %566 = vmatprep.subr.mxu0 0.0
      %567 = vmatpush2.msra.mxu0 0.0
      %568 = vmatprep.subr.mxu0 0.0
      %569 = vmatpush2.msra.mxu0 0.0
      %570 = vmatprep.subr.mxu0 0.0
      %571 = vmatpush2.msra.mxu0 0.0
      %572 = vmatprep.subr.mxu0 0.0
      %573 = vmatpush2.msra.mxu0 0.0
      %574 = vmatprep.subr.mxu0 0.0
      %575 = vmatpush2.msra.mxu0 0.0
      %576 = vmatprep.subr.mxu0 0.0
      %577 = vmatpush2.msra.mxu0 0.0
      %578 = vmatprep.subr.mxu0 0.0
      %579 = vmatpush2.msra.mxu0 0.0
      %580 = vmatprep.subr.mxu0 0.0
      %581 = vmatpush2.msra.mxu0 0.0
      %582 = vmatprep.subr.mxu0 0.0
      %583 = vmatpush2.msra.mxu0 0.0
      %584 = vmatprep.subr.mxu0 0.0
      %585 = vmatpush2.msra.mxu0 0.0
      %586 = vmatprep.subr.mxu0 0.0
      %587 = vmatpush2.msra.mxu0 0.0
      %588 = vmatprep.mubr.f32.mxu0 0.0
      %589 = vmatmul.mubr.f32.gmra.mxu0 %v477
      %v590 = vpop.f32.mrf.mxu0
      %v591 = vadd.f32 %v474, %v590
      %v592 = vpop.f32.mrf.mxu0
      %593 = vmatprep.mubr.f32.mxu0 0.0
      %594 = vmatmul.mubr.f32.gmra.mxu0 %v480
      %v595 = vpop.f32.mrf.mxu0
      %v596 = vadd.f32 %v474, %v595
      %v597 = vpop.f32.mrf.mxu0
      %598 = vmatprep.mubr.f32.mxu0 0.0
      %599 = vmatmul.mubr.f32.gmra.mxu0 %v483
      %v600 = vpop.f32.mrf.mxu0
      %v601 = vadd.f32 %v474, %v600
      %v602 = vpop.f32.mrf.mxu0
      %603 = vmatprep.mubr.f32.mxu0 0.0
      %604 = vmatmul.mubr.f32.gmra.mxu0 %v486
      %v605 = vpop.f32.mrf.mxu0
      %v606 = vadd.f32 %v474, %v605
      %v607 = vpop.f32.mrf.mxu0
      %608 = vmatprep.mubr.f32.mxu0 0.0
      %609 = vmatmul.mubr.f32.gmra.mxu0 %v489
      %v610 = vpop.f32.mrf.mxu0
      %v611 = vadd.f32 %v474, %v610
      %v612 = vpop.f32.mrf.mxu0
      %613 = vmatprep.mubr.f32.mxu0 0.0
      %614 = vmatmul.mubr.f32.gmra.mxu0 %v492
      %v615 = vpop.f32.mrf.mxu0
      %v616 = vadd.f32 %v474, %v615
      %v617 = vpop.f32.mrf.mxu0
      %618 = vmatprep.mubr.f32.mxu0 0.0
      %619 = vmatmul.mubr.f32.gmra.mxu0 %v495
      %v620 = vpop.f32.mrf.mxu0
      %v621 = vadd.f32 %v474, %v620
      %v622 = vpop.f32.mrf.mxu0
      %623 = vmatprep.mubr.f32.mxu0 0.0
      %624 = vmatmul.mubr.f32.gmra.mxu0 %v498
      %v625 = vpop.f32.mrf.mxu0
      %v626 = vadd.f32 %v474, %v625
      %v627 = vpop.f32.mrf.mxu0
      %628 = vmatprep.mubr.f32.mxu0 0.0
      %629 = vmatmul.mubr.f32.gmra.mxu0 %v501
      %v630 = vpop.f32.mrf.mxu0
      %v631 = vadd.f32 %v474, %v630
      %v632 = vpop.f32.mrf.mxu0
      %633 = vmatprep.mubr.f32.mxu0 0.0
      %634 = vmatmul.mubr.f32.gmra.mxu0 %v504
      %v635 = vpop.f32.mrf.mxu0
      %v636 = vadd.f32 %v474, %v635
      %v637 = vpop.f32.mrf.mxu0
      %638 = vmatprep.mubr.f32.mxu0 0.0
      %639 = vmatmul.mubr.f32.gmra.mxu0 %v507
      %v640 = vpop.f32.mrf.mxu0
      %v641 = vadd.f32 %v474, %v640
      %v642 = vpop.f32.mrf.mxu0
      %643 = vmatprep.mubr.f32.mxu0 0.0
      %644 = vmatmul.mubr.f32.gmra.mxu0 %v510
      %v645 = vpop.f32.mrf.mxu0
      %v646 = vadd.f32 %v474, %v645
      %v647 = vpop.f32.mrf.mxu0
      %648 = vmatprep.mubr.f32.mxu0 0.0
      %649 = vmatmul.mubr.f32.gmra.mxu0 %v513
      %v650 = vpop.f32.mrf.mxu0
      %v651 = vadd.f32 %v474, %v650
      %v652 = vpop.f32.mrf.mxu0
      %653 = vmatprep.mubr.f32.mxu0 0.0
      %654 = vmatmul.mubr.f32.gmra.mxu0 %v516
      %v655 = vpop.f32.mrf.mxu0
      %v656 = vadd.f32 %v474, %v655
      %v657 = vpop.f32.mrf.mxu0
      %658 = vmatprep.mubr.f32.mxu0 0.0
      %659 = vmatmul.mubr.f32.gmra.mxu0 %v519
      %v660 = vpop.f32.mrf.mxu0
      %v661 = vadd.f32 %v474, %v660
      %v662 = vpop.f32.mrf.mxu0
      %663 = vmatprep.mubr.f32.mxu0 0.0
      %664 = vmatmul.mubr.f32.gmra.mxu0 %v522
      %v665 = vpop.f32.mrf.mxu0
      %v666 = vadd.f32 %v474, %v665
      %v667 = vpop.f32.mrf.mxu0
      %668 = vdwg.mxu0
      %vm669 = vcmask 64512
      %v670 = vsel %vm669, %v591, -inf
      %671 = vmax.xlane.f32.xlu0 %v670
      %v672 = vpop.xlane.xlu0 %671
      %v673 = vsel %vm669, %v596, -inf
      %674 = vmax.xlane.f32.xlu0 %v673
      %v675 = vpop.xlane.xlu0 %674
      %v676 = vsel %vm669, %v601, -inf
      %677 = vmax.xlane.f32.xlu0 %v676
      %v678 = vpop.xlane.xlu0 %677
      %v679 = vsel %vm669, %v606, -inf
      %680 = vmax.xlane.f32.xlu0 %v679
      %v681 = vpop.xlane.xlu0 %680
      %v682 = vsel %vm669, %v611, -inf
      %683 = vmax.xlane.f32.xlu0 %v682
      %v684 = vpop.xlane.xlu0 %683
      %v685 = vsel %vm669, %v616, -inf
      %686 = vmax.xlane.f32.xlu0 %v685
      %v687 = vpop.xlane.xlu0 %686
      %v688 = vsel %vm669, %v621, -inf
      %689 = vmax.xlane.f32.xlu0 %v688
      %v690 = vpop.xlane.xlu0 %689
      %v691 = vsel %vm669, %v626, -inf
      %692 = vmax.xlane.f32.xlu0 %v691
      %v693 = vpop.xlane.xlu0 %692
      %v694 = vsel %vm669, %v631, -inf
      %695 = vmax.xlane.f32.xlu0 %v694
      %v696 = vpop.xlane.xlu0 %695
      %v697 = vsel %vm669, %v636, -inf
      %698 = vmax.xlane.f32.xlu0 %v697
      %v699 = vpop.xlane.xlu0 %698
      %v700 = vsel %vm669, %v641, -inf
      %701 = vmax.xlane.f32.xlu0 %v700
      %v702 = vpop.xlane.xlu0 %701
      %v703 = vsel %vm669, %v646, -inf
      %704 = vmax.xlane.f32.xlu0 %v703
      %v705 = vpop.xlane.xlu0 %704
      %v706 = vsel %vm669, %v651, -inf
      %707 = vmax.xlane.f32.xlu0 %v706
      %v708 = vpop.xlane.xlu0 %707
      %v709 = vsel %vm669, %v656, -inf
      %710 = vmax.xlane.f32.xlu0 %v709
      %v711 = vpop.xlane.xlu0 %710
      %v712 = vsel %vm669, %v661, -inf
      %713 = vmax.xlane.f32.xlu0 %v712
      %v714 = vpop.xlane.xlu0 %713
      %v715 = vsel %vm669, %v666, -inf
      %716 = vmax.xlane.f32.xlu0 %v715
      %v717 = vpop.xlane.xlu0 %716
      %v718 = vsub.f32 %v591, %v672
      %v719 = vsub.f32 %v596, %v675
      %v720 = vsub.f32 %v601, %v678
      %v721 = vsub.f32 %v606, %v681
      %v722 = vsub.f32 %v611, %v684
      %v723 = vsub.f32 %v616, %v687
      %v724 = vsub.f32 %v621, %v690
      %v725 = vsub.f32 %v626, %v693
      %v726 = vsub.f32 %v631, %v696
      %v727 = vsub.f32 %v636, %v699
      %v728 = vsub.f32 %v641, %v702
      %v729 = vsub.f32 %v646, %v705
      %v730 = vsub.f32 %v651, %v708
      %v731 = vsub.f32 %v656, %v711
      %v732 = vsub.f32 %v661, %v714
      %v733 = vsub.f32 %v666, %v717
      %v734 = vmul.f32 %v718, 1.442695
      %v735 = vpow.pop %v734
      %v736 = vmul.f32 %v719, 1.442695
      %v737 = vpow.pop %v736
      %v738 = vmul.f32 %v720, 1.442695
      %v739 = vpow.pop %v738
      %v740 = vmul.f32 %v721, 1.442695
      %v741 = vpow.pop %v740
      %v742 = vmul.f32 %v722, 1.442695
      %v743 = vpow.pop %v742
      %v744 = vmul.f32 %v723, 1.442695
      %v745 = vpow.pop %v744
      %v746 = vmul.f32 %v724, 1.442695
      %v747 = vpow.pop %v746
      %v748 = vmul.f32 %v725, 1.442695
      %v749 = vpow.pop %v748
      %v750 = vmul.f32 %v726, 1.442695
      %v751 = vpow.pop %v750
      %v752 = vmul.f32 %v727, 1.442695
      %v753 = vpow.pop %v752
      %v754 = vmul.f32 %v728, 1.442695
      %v755 = vpow.pop %v754
      %v756 = vmul.f32 %v729, 1.442695
      %v757 = vpow.pop %v756
      %v758 = vmul.f32 %v730, 1.442695
      %v759 = vpow.pop %v758
      %v760 = vmul.f32 %v731, 1.442695
      %v761 = vpow.pop %v760
      %v762 = vmul.f32 %v732, 1.442695
      %v763 = vpow.pop %v762
      %v764 = vmul.f32 %v733, 1.442695
      %v765 = vpow.pop %v764
      %v766 = vsel %vm669, %v735, 0.0
      %767 = vadd.xlane.f32.xlu0 %v766
      %v768 = vpop.xlane.xlu0 %767
      %v769 = vsel %vm669, %v737, 0.0
      %770 = vadd.xlane.f32.xlu0 %v769
      %v771 = vpop.xlane.xlu0 %770
      %v772 = vsel %vm669, %v739, 0.0
      %773 = vadd.xlane.f32.xlu0 %v772
      %v774 = vpop.xlane.xlu0 %773
      %v775 = vsel %vm669, %v741, 0.0
      %776 = vadd.xlane.f32.xlu0 %v775
      %v777 = vpop.xlane.xlu0 %776
      %v778 = vsel %vm669, %v743, 0.0
      %779 = vadd.xlane.f32.xlu0 %v778
      %v780 = vpop.xlane.xlu0 %779
      %v781 = vsel %vm669, %v745, 0.0
      %782 = vadd.xlane.f32.xlu0 %v781
      %v783 = vpop.xlane.xlu0 %782
      %v784 = vsel %vm669, %v747, 0.0
      %785 = vadd.xlane.f32.xlu0 %v784
      %v786 = vpop.xlane.xlu0 %785
      %v787 = vsel %vm669, %v749, 0.0
      %788 = vadd.xlane.f32.xlu0 %v787
      %v789 = vpop.xlane.xlu0 %788
      %v790 = vsel %vm669, %v751, 0.0
      %791 = vadd.xlane.f32.xlu0 %v790
      %v792 = vpop.xlane.xlu0 %791
      %v793 = vsel %vm669, %v753, 0.0
      %794 = vadd.xlane.f32.xlu0 %v793
      %v795 = vpop.xlane.xlu0 %794
      %v796 = vsel %vm669, %v755, 0.0
      %797 = vadd.xlane.f32.xlu0 %v796
      %v798 = vpop.xlane.xlu0 %797
      %v799 = vsel %vm669, %v757, 0.0
      %800 = vadd.xlane.f32.xlu0 %v799
      %v801 = vpop.xlane.xlu0 %800
      %v802 = vsel %vm669, %v759, 0.0
      %803 = vadd.xlane.f32.xlu0 %v802
      %v804 = vpop.xlane.xlu0 %803
      %v805 = vsel %vm669, %v761, 0.0
      %806 = vadd.xlane.f32.xlu0 %v805
      %v807 = vpop.xlane.xlu0 %806
      %v808 = vsel %vm669, %v763, 0.0
      %809 = vadd.xlane.f32.xlu0 %v808
      %v810 = vpop.xlane.xlu0 %809
      %v811 = vsel %vm669, %v765, 0.0
      %812 = vadd.xlane.f32.xlu0 %v811
      %v813 = vpop.xlane.xlu0 %812
      %v814 = vrcp.pop %v768
      %v815 = vmul.f32 %v735, %v814
      %v816 = vrcp.pop %v771
      %v817 = vmul.f32 %v737, %v816
      %v818 = vrcp.pop %v774
      %v819 = vmul.f32 %v739, %v818
      %v820 = vrcp.pop %v777
      %v821 = vmul.f32 %v741, %v820
      %v822 = vrcp.pop %v780
      %v823 = vmul.f32 %v743, %v822
      %v824 = vrcp.pop %v783
      %v825 = vmul.f32 %v745, %v824
      %v826 = vrcp.pop %v786
      %v827 = vmul.f32 %v747, %v826
      %v828 = vrcp.pop %v789
      %v829 = vmul.f32 %v749, %v828
      %v830 = vrcp.pop %v792
      %v831 = vmul.f32 %v751, %v830
      %v832 = vrcp.pop %v795
      %v833 = vmul.f32 %v753, %v832
      %v834 = vrcp.pop %v798
      %v835 = vmul.f32 %v755, %v834
      %v836 = vrcp.pop %v801
      %v837 = vmul.f32 %v757, %v836
      %v838 = vrcp.pop %v804
      %v839 = vmul.f32 %v759, %v838
      %v840 = vrcp.pop %v807
      %v841 = vmul.f32 %v761, %v840
      %v842 = vrcp.pop %v810
      %v843 = vmul.f32 %v763, %v842
      %v844 = vrcp.pop %v813
      %v845 = vmul.f32 %v765, %v844
      %846 = vst.msk [vmem:[%s226] sm:$0xff] %vm669, %v815
      %847 = vst.msk [vmem:[%s226 + $0x8] sm:$0xff] %vm669, %v817
      %848 = vst.msk [vmem:[%s226 + $0x10] sm:$0xff] %vm669, %v819
      %849 = vst.msk [vmem:[%s226 + $0x18] sm:$0xff] %vm669, %v821
      %850 = vst.msk [vmem:[%s226 + $0x20] sm:$0xff] %vm669, %v823
      %851 = vst.msk [vmem:[%s226 + $0x28] sm:$0xff] %vm669, %v825
      %852 = vst.msk [vmem:[%s226 + $0x30] sm:$0xff] %vm669, %v827
      %853 = vst.msk [vmem:[%s226 + $0x38] sm:$0xff] %vm669, %v829
      %854 = vst.msk [vmem:[%s226 + $0x40] sm:$0xff] %vm669, %v831
      %855 = vst.msk [vmem:[%s226 + $0x48] sm:$0xff] %vm669, %v833
      %856 = vst.msk [vmem:[%s226 + $0x50] sm:$0xff] %vm669, %v835
      %857 = vst.msk [vmem:[%s226 + $0x58] sm:$0xff] %vm669, %v837
      %858 = vst.msk [vmem:[%s226 + $0x60] sm:$0xff] %vm669, %v839
      %859 = vst.msk [vmem:[%s226 + $0x68] sm:$0xff] %vm669, %v841
      %860 = vst.msk [vmem:[%s226 + $0x70] sm:$0xff] %vm669, %v843
      %861 = vst.msk [vmem:[%s226 + $0x78] sm:$0xff] %vm669, %v845
      %s862 = smul.u32 16, %s16
      %p863 = scmp.lt.s32.totalorder %s862, 31
      %s864 = scalar_select %p863, %s862, 31
      %s865 = smul.addr %s864, 8
      %s866 = scalar_lea.vmem %s5, %s865
      // Predicated region
      $region41: #{pinet_forward.1} parent=39 // pred_check
        %p867 = pneg %p144
      $region42: #{pinet_forward.1} parent=39 // pred_check_branch
        %869 = sbr.rel (%p867) target = $region44
      $region43: #{pinet_forward.1} parent=39 // pred_region
        %s870 = smul.u32 16, %s16
      $region44: #{pinet_forward.1} parent=39 // pred_fallthru
        _
    $region40: #{pinet_forward.1} parent=5 // pred_fallthru
      _
    %p871 = scmp.le.s32.totalorder 2, %s11
    // Predicated region
    $region45: #{pinet_forward.1} parent=5 // pred_check
      %p872 = pneg %p871
    $region46: #{pinet_forward.1} parent=5 // pred_check_branch
      %874 = sbr.rel (%p872) target = $region48
    $region47: #{pinet_forward.1} parent=5 // pred_region
      %s875 = ssub.s32 %s11, 2
      // Predicated region
      $region49: #{pinet_forward.1} parent=47 // pred_check
        %p876 = pneg %p150
      $region50: #{pinet_forward.1} parent=47 // pred_check_branch
        %878 = sbr.rel (%p876) target = $region52
      $region51: #{pinet_forward.1} parent=47 // pred_region
        %s879 = smul.u32 16, %s17
        %p880 = scmp.lt.s32.totalorder %s879, 31
        %s881 = scalar_select %p880, %s879, 31
        %s882 = smul.addr %s881, 8
        %s883 = scalar_lea.vmem %s5, %s882
      $region52: #{pinet_forward.1} parent=47 // pred_fallthru
        _
    $region48: #{pinet_forward.1} parent=5 // pred_fallthru
      _
  $region6: #{pinet_forward.1} parent=0 // loop_footer
    %s15 = sadd.s32 1, %s11
  $region7: #{pinet_forward.1} parent=0 // loop_footer_branch
    %10 = sbr.rel target = $region3
  $region8: #{pinet_forward.1} parent=0 // loop_exit
    _

</llo_original>
